<compile_context>
chip_gen: v7x
topology: tpu7x:2x2x1
jax: 0.10.0
libtpu: 0.0.40
codegen_flags: <defaults>
</compile_context>

<pallas_src>
import jax
import jax.numpy as jnp
from jax.experimental import pallas as pl
from jax.experimental.pallas import tpu as pltpu


def mf_bias_kernel(uidx_sref, iidx_sref, urow_ref, irow_ref, gb_ref, out_ref):
    # uidx_sref / iidx_sref are the scalar-prefetch index arrays; they are only
    # consumed by the BlockSpec index_maps (the DMA gather), not by the body.
    del uidx_sref, iidx_sref

    r = pl.program_id(1)                 # row within the current output tile
    tile_m = out_ref.shape[-1]

    @pl.when(r == 0)
    def _init():
        out_ref[...] = jnp.zeros_like(out_ref)

    # Augmented rows: u = [emb, u_bias, 1, 0...], i = [emb, 1, i_bias, 0...]
    # => reduced product == interaction + user_bias + item_bias (exact in f32).
    val = jnp.sum(urow_ref[...] * irow_ref[...], axis=-1, keepdims=True)  # (1,1,1)
    val = val + gb_ref[0]                                                 # + global bias

    # Scatter the scalar result into lane r of the resident output slab.
    lane = jax.lax.broadcasted_iota(jnp.int32, (1, 1, tile_m), 2)
    out_ref[...] = jnp.where(lane == r, val, out_ref[...])


def mf_with_bias_forward(user, item, params):
    """Reproduces MatrixFactorizationWithBias.forward semantics."""
    user = jnp.asarray(user)
    item = jnp.asarray(item)

    # PyTorch module's shape-adjustment logic.
    if user.ndim > item.ndim:
        item = item.reshape(-1, 1)
    elif user.ndim < item.ndim:
        user = user.reshape(-1, 1)

    out_bshape = jnp.broadcast_shapes(user.shape, item.shape)

    u_emb = params["user_emb"].astype(jnp.float32)
    i_emb = params["item_emb"].astype(jnp.float32)
    u_bias = params["user_bias"].astype(jnp.float32)
    i_bias = params["item_bias"].astype(jnp.float32)
    gb = params["global_bias"].reshape((1,)).astype(jnp.float32)

    n_users, d = u_emb.shape
    n_items, _ = i_emb.shape

    # Fold the per-row biases into the tables, pad the feature dim to a lane
    # multiple (zero padding -> contributes 0 to the dot product), and use a
    # (rows, 1, d_pad) layout so every gathered block's trailing dims equal the
    # full array trailing dims.
    u_aug = jnp.concatenate([u_emb, u_bias, jnp.ones((n_users, 1), jnp.float32)], axis=1)
    i_aug = jnp.concatenate([i_emb, jnp.ones((n_items, 1), jnp.float32), i_bias], axis=1)
    d_aug = d + 2
    d_pad = ((d_aug + 127) // 128) * 128
    u_aug = jnp.pad(u_aug, ((0, 0), (0, d_pad - d_aug))).reshape(n_users, 1, d_pad)
    i_aug = jnp.pad(i_aug, ((0, 0), (0, d_pad - d_aug))).reshape(n_items, 1, d_pad)

    # Flattened, broadcast, clamped indices (scalar-prefetch operands -> SMEM).
    u_flat = jnp.broadcast_to(user, out_bshape).reshape(-1).astype(jnp.int32)
    i_flat = jnp.broadcast_to(item, out_bshape).reshape(-1).astype(jnp.int32)
    u_flat = jnp.clip(u_flat, 0, n_users - 1)   # torch would raise on OOB; we clamp
    i_flat = jnp.clip(i_flat, 0, n_items - 1)

    m = int(u_flat.shape[0])
    tile_m = min(512, ((m + 127) // 128) * 128)      # lane-dense output slab width
    num_tiles = (m + tile_m - 1) // tile_m
    m_pad = num_tiles * tile_m
    u_flat = jnp.pad(u_flat, (0, m_pad - m))
    i_flat = jnp.pad(i_flat, (0, m_pad - m))

    grid_spec = pltpu.PrefetchScalarGridSpec(
        num_scalar_prefetch=2,
        grid=(num_tiles, tile_m),
        in_specs=[
            # Row gather straight from HBM, driven by the prefetched indices.
            pl.BlockSpec((1, 1, d_pad),
                         lambda t, r, uidx, iidx: (uidx[t * tile_m + r], 0, 0)),
            pl.BlockSpec((1, 1, d_pad),
                         lambda t, r, uidx, iidx: (iidx[t * tile_m + r], 0, 0)),
            # global_bias: scalar parameter in SMEM (no 128-lane VMEM padding).
            pl.BlockSpec(memory_space=pltpu.MemorySpace.SMEM),
        ],
        out_specs=pl.BlockSpec((1, 1, tile_m),
                               lambda t, r, uidx, iidx: (t, 0, 0)),
    )

    cost = pl.CostEstimate(
        flops=2 * m_pad * d_pad,
        transcendentals=0,
        bytes_accessed=m_pad * (2 * d_pad * 4 + 2 * 4 + 4),
    )

    out = pl.pallas_call(
        mf_bias_kernel,
        out_shape=jax.ShapeDtypeStruct((num_tiles, 1, tile_m), jnp.float32),
        grid_spec=grid_spec,
        compiler_params=pltpu.CompilerParams(
            dimension_semantics=("parallel", "arbitrary"),
        ),
        cost_estimate=cost,
    )(u_flat, i_flat, u_aug, i_aug, gb)

    return out.reshape(-1)[:m].reshape(out_bshape)


def reference_forward(user, item, params):
    """Pure-JAX reference mirroring the PyTorch module."""
    user = jnp.asarray(user)
    item = jnp.asarray(item)
    if user.ndim > item.ndim:
        item = item.reshape(-1, 1)
    elif user.ndim < item.ndim:
        user = user.reshape(-1, 1)
    u_e = params["user_emb"][user]
    i_e = params["item_emb"][item]
    inter = jnp.sum(u_e * i_e, axis=-1)
    u_b = params["user_bias"][user][..., 0]
    i_b = params["item_bias"][item][..., 0]
    return inter + u_b + i_b + params["global_bias"][0]


def init_params(key, n_users, n_items, embedding_dim):
    k1, k2, k3, k4 = jax.random.split(key, 4)
    # nn.Embedding default init ~ N(0, 1); global_bias init to zeros.
    return {
        "user_emb": jax.random.normal(k1, (n_users, embedding_dim), jnp.float32),
        "item_emb": jax.random.normal(k2, (n_items, embedding_dim), jnp.float32),
        "user_bias": jax.random.normal(k3, (n_users, 1), jnp.float32),
        "item_bias": jax.random.normal(k4, (n_items, 1), jnp.float32),
        "global_bias": jnp.zeros((1,), jnp.float32),
    }


if __name__ == "__main__":
    n_users, n_items, embedding_dim = 64, 96, 20
    batch = 8

    key = jax.random.PRNGKey(0)
    pkey, ukey, ikey = jax.random.split(key, 3)
    params = init_params(pkey, n_users, n_items, embedding_dim)

    # 1-D case.
    user_idx = jax.random.randint(ukey, (batch,), 0, n_users, dtype=jnp.int32)
    item_idx = jax.random.randint(ikey, (batch,), 0, n_items, dtype=jnp.int32)

    out = mf_with_bias_forward(user_idx, item_idx, params)
    out = jax.block_until_ready(out)
    ref = reference_forward(user_idx, item_idx, params)
    assert out.shape == ref.shape == (batch,)
    assert jnp.allclose(out, ref, atol=1e-4, rtol=1e-5), (out, ref)

    # 2-D same-shape case (exercises broadcast/reshape-back path).
    u2 = user_idx.reshape(2, 4)
    i2 = item_idx.reshape(2, 4)
    out2 = jax.block_until_ready(mf_with_bias_forward(u2, i2, params))
    ref2 = reference_forward(u2, i2, params)
    assert out2.shape == ref2.shape == (2, 4)
    assert jnp.allclose(out2, ref2, atol=1e-4, rtol=1e-5), (out2, ref2)

    print("KERNEL_OK")
</pallas_src>

<mosaic_0001>
module attributes {stable_mosaic.version = 11 : i64} {
  func.func @mf_bias_kernel(%arg0: i32, %arg1: i32, %arg2: memref<128xi32, #tpu.memory_space<smem>>, %arg3: memref<128xi32, #tpu.memory_space<smem>>, %arg4: memref<1x1x128xf32, #tpu.memory_space<vmem>>, %arg5: memref<1x1x128xf32, #tpu.memory_space<vmem>>, %arg6: memref<1xf32, #tpu.memory_space<smem>>, %arg7: memref<1x1x128xf32, #tpu.memory_space<vmem>>) attributes {dimension_semantics = [#tpu.dimension_semantics<parallel>, #tpu.dimension_semantics<arbitrary>], iteration_bounds = array<i64: 1, 128>, scalar_prefetch = 2 : i64, scratch_operands = 0 : i64, tpu.core_type = #tpu.core_type<tc>, window_params = [{transform_indices = @transform_0, window_bounds = array<i64: 1, 1, 128>}, {transform_indices = @transform_1, window_bounds = array<i64: 1, 1, 128>}, {transform_indices = @transform_2, window_bounds = array<i64: 1>}, {transform_indices = @transform_3, window_bounds = array<i64: 1, 1, 128>}]} {
    %c0_i32 = arith.constant 0 : i32
    %0 = arith.cmpi eq, %arg1, %c0_i32 : i32
    %1 = arith.extui %0 : i1 to i32
    %c0_i32_0 = arith.constant 0 : i32
    %2 = arith.cmpi ne, %1, %c0_i32_0 : i32
    scf.if %2 {
      %cst_13 = arith.constant 0.000000e+00 : f32
      %19 = vector.broadcast %cst_13 : f32 to vector<1x1x128xf32>
      %c0_14 = arith.constant 0 : index
      %c0_15 = arith.constant 0 : index
      %c0_16 = arith.constant 0 : index
      %20 = vector.load %arg7[%c0_14, %c0_15, %c0_16] : memref<1x1x128xf32, #tpu.memory_space<vmem>>, vector<1x1x128xf32>
      tpu.vector_store %arg7[%c0_14, %c0_15, %c0_16], %19 {strides = array<i32>} : memref<1x1x128xf32, #tpu.memory_space<vmem>>, vector<1x1x128xf32>,
    } else {
    }
    %c0 = arith.constant 0 : index
    %c0_1 = arith.constant 0 : index
    %c0_2 = arith.constant 0 : index
    %3 = vector.load %arg4[%c0, %c0_1, %c0_2] : memref<1x1x128xf32, #tpu.memory_space<vmem>>, vector<1x1x128xf32>
    %c0_3 = arith.constant 0 : index
    %c0_4 = arith.constant 0 : index
    %c0_5 = arith.constant 0 : index
    %4 = vector.load %arg5[%c0_3, %c0_4, %c0_5] : memref<1x1x128xf32, #tpu.memory_space<vmem>>, vector<1x1x128xf32>
    %5 = arith.mulf %3, %4 : vector<1x1x128xf32>
    %cst = arith.constant dense<0.000000e+00> : vector<1x1xf32>
    %6 = vector.multi_reduction <add>, %5, %cst [2] : vector<1x1x128xf32> to vector<1x1xf32>
    %7 = vector.shape_cast %6 : vector<1x1xf32> to vector<1x1x1xf32>
    %c0_6 = arith.constant 0 : index
    %8 = memref.load %arg6[%c0_6] : memref<1xf32, #tpu.memory_space<smem>>
    %9 = vector.broadcast %8 : f32 to vector<1x1x1xf32>
    %10 = arith.addf %7, %9 : vector<1x1x1xf32>
    %11 = tpu.iota {dimensions = array<i32: 2>} : vector<1x1x128xi32>
    %12 = vector.broadcast %arg1 : i32 to vector<1x1x128xi32>
    %13 = arith.cmpi eq, %11, %12 : vector<1x1x128xi32>
    %c0_7 = arith.constant 0 : index
    %c0_8 = arith.constant 0 : index
    %c0_9 = arith.constant 0 : index
    %14 = vector.load %arg7[%c0_7, %c0_8, %c0_9] : memref<1x1x128xf32, #tpu.memory_space<vmem>>, vector<1x1x128xf32>
    %15 = vector.shape_cast %10 : vector<1x1x1xf32> to vector<1x1x1xf32>
    %16 = vector.broadcast %15 : vector<1x1x1xf32> to vector<1x1x128xf32>
    %17 = arith.select %13, %16, %14 : vector<1x1x128xi1>, vector<1x1x128xf32>
    %c0_10 = arith.constant 0 : index
    %c0_11 = arith.constant 0 : index
    %c0_12 = arith.constant 0 : index
    %18 = vector.load %arg7[%c0_10, %c0_11, %c0_12] : memref<1x1x128xf32, #tpu.memory_space<vmem>>, vector<1x1x128xf32>
    tpu.vector_store %arg7[%c0_10, %c0_11, %c0_12], %17 {strides = array<i32>} : memref<1x1x128xf32, #tpu.memory_space<vmem>>, vector<1x1x128xf32>,
    return
  }
  func.func @transform_0(%arg0: i32, %arg1: i32, %arg2: memref<128xi32, #tpu.memory_space<smem>>, %arg3: memref<128xi32, #tpu.memory_space<smem>>) -> (i32, i32, i32) {
    %c128_i32 = arith.constant 128 : i32
    %0 = arith.muli %arg0, %c128_i32 : i32
    %1 = arith.addi %0, %arg1 : i32
    %2 = arith.index_cast %1 : i32 to index
    %3 = memref.load %arg2[%2] : memref<128xi32, #tpu.memory_space<smem>>
    %c0_i32 = arith.constant 0 : i32
    %c0_i32_0 = arith.constant 0 : i32
    %c0_i32_1 = arith.constant 0 : i32
    return %3, %c0_i32, %c0_i32_0 : i32, i32, i32
  }
  func.func @transform_1(%arg0: i32, %arg1: i32, %arg2: memref<128xi32, #tpu.memory_space<smem>>, %arg3: memref<128xi32, #tpu.memory_space<smem>>) -> (i32, i32, i32) {
    %c128_i32 = arith.constant 128 : i32
    %0 = arith.muli %arg0, %c128_i32 : i32
    %1 = arith.addi %0, %arg1 : i32
    %2 = arith.index_cast %1 : i32 to index
    %3 = memref.load %arg3[%2] : memref<128xi32, #tpu.memory_space<smem>>
    %c0_i32 = arith.constant 0 : i32
    %c0_i32_0 = arith.constant 0 : i32
    %c0_i32_1 = arith.constant 0 : i32
    return %3, %c0_i32, %c0_i32_0 : i32, i32, i32
  }
  func.func @transform_2(%arg0: i32, %arg1: i32, %arg2: memref<128xi32, #tpu.memory_space<smem>>, %arg3: memref<128xi32, #tpu.memory_space<smem>>) -> i32 {
    %c0_i32 = arith.constant 0 : i32
    %c0_i32_0 = arith.constant 0 : i32
    return %c0_i32 : i32
  }
  func.func @transform_3(%arg0: i32, %arg1: i32, %arg2: memref<128xi32, #tpu.memory_space<smem>>, %arg3: memref<128xi32, #tpu.memory_space<smem>>) -> (i32, i32, i32) {
    %c0_i32 = arith.constant 0 : i32
    %c0_i32_0 = arith.constant 0 : i32
    %c0_i32_1 = arith.constant 0 : i32
    return %arg0, %c0_i32, %c0_i32_0 : i32, i32, i32
  }
}

</mosaic_0001>

<llo_original>
// kernel: tpu_custom_call.1
$region0: #{tpu_custom_call.1}
  #allocation0 [shape = 'u32[]', space=smem, size = 0x4, offset = 0x4, fixed_abs, tag = 'smem constant byte address 0x4 - core index']
  #allocation1 [shape = 'u32[144,128]{1,0:T(1,128)}', space=vmem, size = 0x12000, scoped, tag = 'internal scratch']
  #allocation2 [shape = 's32[1]{0}', space=sflag, size = 0x4, scoped, tag = 'scoped memory for tpu_custom_call.1']
  #allocation3 [shape = 'u8[512]{0}', space=smem, size = 0x200, scoped, tag = 'prefetched SMEM operand 0']
  #allocation4 [shape = 'u8[512]{0}', space=smem, size = 0x200, scoped, tag = 'prefetched SMEM operand 1']
  #allocation5 [shape = 'f32[1]{0:T(128)S(6)}', space=smem, size = 0x200, scoped, tag = 'scoped memory for tpu_custom_call.1']
  %s0 = inlined_call_operand.vmem [shape: s32[128], index: 0, kind: input, shape index: {}]
  %s1 = inlined_call_operand.vmem [shape: s32[128], index: 1, kind: input, shape index: {}]
  %s2 = inlined_call_operand.hbm [shape: f32[64,1,128], index: 2, kind: input, shape index: {}]
  %s3 = inlined_call_operand.hbm [shape: f32[96,1,128], index: 3, kind: input, shape index: {}]
  %s4 = inlined_call_operand.<no memory space> [shape: f32[1], index: 4, kind: input, shape index: {}]
  %s5 = inlined_call_operand.hbm [shape: f32[1,1,128], index: 5, kind: output, shape index: {}]
  %s6 = sld [smem:[#allocation0]]
  $region57: #{tpu_custom_call.1} parent=0
    _
  %s8 = ssub.s32 1, %s6
  %s9 = scalar_select 0, %s8, %s6
  %s10 = sshll.u32 %s0, 4
  %s11 = int_to_ptr.vmem [resolvable:$true] %s10
  %13 = dma.vmem_to_smem %s11, 16, [#allocation3], [#allocation2]
  %s14 = sshll.u32 %s1, 4
  %s15 = int_to_ptr.vmem [resolvable:$true] %s14
  %17 = dma.vmem_to_smem %s15, 16, [#allocation4], [#allocation2]
  %18 = sst [smem:[#allocation5]] %s4
  %19 = dma.done [#allocation2], 32
  %20 = sfence
  $region1: #{tpu_custom_call.1} parent=0
    #allocation6 [shape = 'u8[1024]{0}', space=vmem, size = 0x400, scoped, tag = 'input window, operand 2']
    #allocation7 [shape = 's32[2]{0}', space=sflag, size = 0x8, scoped, tag = 'scoped memory for tpu_custom_call.1']
    #allocation8 [shape = 's32[2]{0}', space=sflag, size = 0x8, scoped, tag = 'scoped memory for tpu_custom_call.1']
    #allocation9 [shape = 'u8[1024]{0}', space=vmem, size = 0x400, scoped, tag = 'input window, operand 3']
    #allocation10 [shape = 's32[2]{0}', space=sflag, size = 0x8, scoped, tag = 'scoped memory for tpu_custom_call.1']
    #allocation11 [shape = 'u8[512]{0}', space=vmem, size = 0x400, scoped, tag = 'output window, operand 0, single buffered']
    %21 = vsyncpa [#allocation7], 0
    %s22 = scalar_lea.sflag [#allocation7], 1
    %23 = vsyncpa %s22, 0
    %24 = vsyncpa [#allocation10], 0
    %s25 = scalar_lea.sflag [#allocation10], 1
    %26 = vsyncpa %s25, 0
    %27 = vsyncpa [#allocation8], 0
    loop: start=0, step=1, limit=130
    $region2: #{tpu_custom_call.1} parent=1 // loop_pre_header
      _
    $region3: #{tpu_custom_call.1} parent=1 // loop_header
      %s29 = sphi 0, %s33
      %p30 = scmp.ge.s32.totalorder %s29, 130
      %s36 = sphi 0, %s48
      %s37 = sphi 0, %s44
      %s38 = sphi 0, %s36
      %s39 = sphi 0, %s37
      %s40 = sphi 0, %s38
      %s41 = sphi 0, %s39
      %s57 = sphi 0, %s59
      %s60 = sphi 0, %s57
      %s61 = sphi 0, %s60
      %s77 = sphi 0, %s61
      %s89 = sphi 0, %s91
      %s92 = sphi 0, %s89
      %s93 = sphi 0, %s92
      %s109 = sphi 0, %s93
      %s113 = sphi 0, %s113
      %s115 = sphi 0, %s113
      %s116 = sphi 0, %s115
      %s130 = sphi 0, %s116
      %s136 = sphi 0, %s138
      %s139 = sphi 0, %s136
      %s140 = sphi 0, %s139
      %s156 = sphi 0, %s140
    $region4: #{tpu_custom_call.1} parent=1 // loop_header_branch
      %32 = sbr.rel (%p30) target = $region8
    $region5: #{tpu_custom_call.1} parent=1 // loop_body
      %s34 = ssub.s32 %s29, 1
      %s35 = ssub.s32 %s29, 2
      %s42 = sadd.s32 1, %s37
      %p43 = scmp.ge.s32.totalorder %s42, 128
      %s44 = scalar_select %p43, 0, %s42
      %s45 = sadd.s32 1, %s36
      %s46 = scalar_select %p43, %s45, %s36
      %p47 = scmp.ge.s32.totalorder %s46, 1
      %s48 = scalar_select %p47, 0, %s46
      %s49 = smul.u32 %s36, 128
      %s50 = sadd.s32 %s49, %s37
      %s51 = sld [smem:[#allocation3 + %s50]]
      %s52 = smul.u32 %s48, 128
      %s53 = sadd.s32 %s52, %s44
      %s54 = sld [smem:[#allocation3 + %s53]]
      %s55 = ssub.s32 %s51, %s54
      %p56 = scmp.eq.s32.totalorder %s55, 0
      %s58 = sadd.s32 %s57, 1
      %s59 = scalar_select %p56, %s57, %s58
      %p62 = pneg %p56
      %p63 = scmp.eq.s32.totalorder %s29, 127
      %p64 = por %p62, %p63
      %p65 = scmp.ne.s32.totalorder %s57, %s60
      %p66 = scmp.eq.s32.totalorder %s29, 0
      %p67 = por %p65, %p66
      %p68 = scmp.ne.s32.totalorder %s57, %s60
      %p69 = scmp.eq.s32.totalorder %s34, 127
      %p70 = por %p68, %p69
      %p71 = scmp.ne.s32.totalorder %s60, %s61
      %p72 = scmp.eq.s32.totalorder %s34, 0
      %p73 = por %p71, %p72
      %p74 = scmp.ne.s32.totalorder %s60, %s61
      %p75 = scmp.eq.s32.totalorder %s35, 127
      %p76 = por %p74, %p75
      %p78 = scmp.ne.s32.totalorder %s61, %s77
      %p79 = scmp.eq.s32.totalorder %s35, 0
      %p80 = por %p78, %p79
      %s81 = smul.u32 %s36, 128
      %s82 = sadd.s32 %s81, %s37
      %s83 = sld [smem:[#allocation4 + %s82]]
      %s84 = smul.u32 %s48, 128
      %s85 = sadd.s32 %s84, %s44
      %s86 = sld [smem:[#allocation4 + %s85]]
      %s87 = ssub.s32 %s83, %s86
      %p88 = scmp.eq.s32.totalorder %s87, 0
      %s90 = sadd.s32 %s89, 1
      %s91 = scalar_select %p88, %s89, %s90
      %p94 = pneg %p88
      %p95 = scmp.eq.s32.totalorder %s29, 127
      %p96 = por %p94, %p95
      %p97 = scmp.ne.s32.totalorder %s89, %s92
      %p98 = scmp.eq.s32.totalorder %s29, 0
      %p99 = por %p97, %p98
      %p100 = scmp.ne.s32.totalorder %s89, %s92
      %p101 = scmp.eq.s32.totalorder %s34, 127
      %p102 = por %p100, %p101
      %p103 = scmp.ne.s32.totalorder %s92, %s93
      %p104 = scmp.eq.s32.totalorder %s34, 0
      %p105 = por %p103, %p104
      %p106 = scmp.ne.s32.totalorder %s92, %s93
      %p107 = scmp.eq.s32.totalorder %s35, 127
      %p108 = por %p106, %p107
      %p110 = scmp.ne.s32.totalorder %s93, %s109
      %p111 = scmp.eq.s32.totalorder %s35, 0
      %p112 = por %p110, %p111
      %s114 = sadd.s32 %s113, 1
      %p117 = scmp.eq.s32.totalorder %s29, 127
      %p118 = scmp.ne.s32.totalorder %s113, %s115
      %p119 = scmp.eq.s32.totalorder %s29, 0
      %p120 = por %p118, %p119
      %p121 = scmp.ne.s32.totalorder %s113, %s115
      %p122 = scmp.eq.s32.totalorder %s34, 127
      %p123 = por %p121, %p122
      %p124 = scmp.ne.s32.totalorder %s115, %s116
      %p125 = scmp.eq.s32.totalorder %s34, 0
      %p126 = por %p124, %p125
      %p127 = scmp.ne.s32.totalorder %s115, %s116
      %p128 = scmp.eq.s32.totalorder %s35, 127
      %p129 = por %p127, %p128
      %p131 = scmp.ne.s32.totalorder %s116, %s130
      %p132 = scmp.eq.s32.totalorder %s35, 0
      %p133 = por %p131, %p132
      %s134 = ssub.s32 %s36, %s48
      %p135 = scmp.eq.s32.totalorder %s134, 0
      %s137 = sadd.s32 %s136, 1
      %s138 = scalar_select %p135, %s136, %s137
      %p141 = pneg %p135
      %p142 = scmp.eq.s32.totalorder %s29, 127
      %p143 = por %p141, %p142
      %p144 = scmp.ne.s32.totalorder %s136, %s139
      %p145 = scmp.eq.s32.totalorder %s29, 0
      %p146 = por %p144, %p145
      %p147 = scmp.ne.s32.totalorder %s136, %s139
      %p148 = scmp.eq.s32.totalorder %s34, 127
      %p149 = por %p147, %p148
      %p150 = scmp.ne.s32.totalorder %s139, %s140
      %p151 = scmp.eq.s32.totalorder %s34, 0
      %p152 = por %p150, %p151
      %p153 = scmp.ne.s32.totalorder %s139, %s140
      %p154 = scmp.eq.s32.totalorder %s35, 127
      %p155 = por %p153, %p154
      %p157 = scmp.ne.s32.totalorder %s140, %s156
      %p158 = scmp.eq.s32.totalorder %s35, 0
      %p159 = por %p157, %p158
      %p160 = scmp.le.s32.totalorder 1, %s29
      %p161 = scmp.lt.s32.totalorder %s29, 129
      %p162 = pnand %p160, %p161
      %p163 = pneg %p162
      // Predicated region
      $region9: #{tpu_custom_call.1} parent=5 // pred_check
        _
      $region10: #{tpu_custom_call.1} parent=5 // pred_check_branch
        %165 = sbr.rel (%p162) target = $region12
      $region11: #{tpu_custom_call.1} parent=5 // pred_region
        %s166 = ssub.s32 %s29, 1
        // Predicated region
        $region13: #{tpu_custom_call.1} parent=11 // pred_check
          %p167 = pneg %p126
        $region14: #{tpu_custom_call.1} parent=11 // pred_check_branch
          %169 = sbr.rel (%p167) target = $region16
        $region15: #{tpu_custom_call.1} parent=11 // pred_region
          _
        $region16: #{tpu_custom_call.1} parent=11 // pred_fallthru
          _
      $region12: #{tpu_custom_call.1} parent=5 // pred_fallthru
        _
      %p170 = scmp.lt.s32.totalorder %s29, 128
      // Predicated region
      $region17: #{tpu_custom_call.1} parent=5 // pred_check
        %p171 = pneg %p170
      $region18: #{tpu_custom_call.1} parent=5 // pred_check_branch
        %173 = sbr.rel (%p171) target = $region20
      $region19: #{tpu_custom_call.1} parent=5 // pred_region
        // Predicated region
        $region21: #{tpu_custom_call.1} parent=19 // pred_check
          %p174 = pneg %p67
        $region22: #{tpu_custom_call.1} parent=19 // pred_check_branch
          %176 = sbr.rel (%p174) target = $region24
        $region23: #{tpu_custom_call.1} parent=19 // pred_region
          %s177 = sand.u32 %s57, 1
          %s178 = scalar_lea.sflag [#allocation7], %s177
          %s179 = sand.u32 %s57, 1
          %s180 = scalar_lea.vmem [#allocation6], %s179
          %s181 = smul.u32 %s36, 128
          %s182 = sadd.s32 %s181, %s37
          %s183 = sld [smem:[#allocation3 + %s182]]
          %s185 = ssub.s32 16, 16
          %186 = vsyncadd %s178, %s185
          %s187 = smul.addr %s183, 16
          %s188 = scalar_lea.hbm %s2, %s187
          %s190 = sshll.u32 %s180, 4
          %s191 = int_to_ptr.vmem [resolvable:$true] %s190
          %193 = dma.hbm_to_vmem [thread:$0]  %s188, 16, %s191, %s178
        $region24: #{tpu_custom_call.1} parent=19 // pred_fallthru
          _
        // Predicated region
        $region25: #{tpu_custom_call.1} parent=19 // pred_check
          %p194 = pneg %p99
        $region26: #{tpu_custom_call.1} parent=19 // pred_check_branch
          %196 = sbr.rel (%p194) target = $region28
        $region27: #{tpu_custom_call.1} parent=19 // pred_region
          %s197 = sand.u32 %s89, 1
          %s198 = scalar_lea.sflag [#allocation10], %s197
          %s199 = sand.u32 %s89, 1
          %s200 = scalar_lea.vmem [#allocation9], %s199
          %s201 = smul.u32 %s36, 128
          %s202 = sadd.s32 %s201, %s37
          %s203 = sld [smem:[#allocation4 + %s202]]
          %s205 = ssub.s32 16, 16
          %206 = vsyncadd %s198, %s205
          %s207 = smul.addr %s203, 16
          %s208 = scalar_lea.hbm %s3, %s207
          %s210 = sshll.u32 %s200, 4
          %s211 = int_to_ptr.vmem [resolvable:$true] %s210
          %213 = dma.hbm_to_vmem [thread:$0]  %s208, 16, %s211, %s198
        $region28: #{tpu_custom_call.1} parent=19 // pred_fallthru
          _
      $region20: #{tpu_custom_call.1} parent=5 // pred_fallthru
        _
      %p214 = scmp.le.s32.totalorder 1, %s29
      %p215 = scmp.lt.s32.totalorder %s29, 129
      %p216 = pnand %p214, %p215
      %p217 = pneg %p216
      // Predicated region
      $region29: #{tpu_custom_call.1} parent=5 // pred_check
        _
      $region30: #{tpu_custom_call.1} parent=5 // pred_check_branch
        %219 = sbr.rel (%p216) target = $region32
      $region31: #{tpu_custom_call.1} parent=5 // pred_region
        %s220 = ssub.s32 %s29, 1
        %s221 = sand.u32 %s60, 1
        %s222 = scalar_lea.sflag [#allocation7], %s221
        %s223 = sand.u32 %s60, 1
        %s224 = scalar_lea.vmem [#allocation6], %s223
        // Predicated region
        $region33: #{tpu_custom_call.1} parent=31 // pred_check
          %p225 = pneg %p73
        $region34: #{tpu_custom_call.1} parent=31 // pred_check_branch
          %227 = sbr.rel (%p225) target = $region36
        $region35: #{tpu_custom_call.1} parent=31 // pred_region
          %228 = dma.done %s222, 16
        $region36: #{tpu_custom_call.1} parent=31 // pred_fallthru
          _
        %s229 = sand.u32 %s92, 1
        %s230 = scalar_lea.sflag [#allocation10], %s229
        %s231 = sand.u32 %s92, 1
        %s232 = scalar_lea.vmem [#allocation9], %s231
        // Predicated region
        $region37: #{tpu_custom_call.1} parent=31 // pred_check
          %p233 = pneg %p105
        $region38: #{tpu_custom_call.1} parent=31 // pred_check_branch
          %235 = sbr.rel (%p233) target = $region40
        $region39: #{tpu_custom_call.1} parent=31 // pred_region
          %236 = dma.done %s230, 16
        $region40: #{tpu_custom_call.1} parent=31 // pred_fallthru
          _
        %s237 = sand.u32 %s60, 1
        %s238 = scalar_lea.sflag [#allocation7], %s237
        %s239 = sand.u32 %s60, 1
        %s240 = scalar_lea.vmem [#allocation6], %s239
        %p241 = pneg %p73
        %p242 = pneg %p70
        %s243 = sand.u32 %s92, 1
        %s244 = scalar_lea.sflag [#allocation10], %s243
        %s245 = sand.u32 %s92, 1
        %s246 = scalar_lea.vmem [#allocation9], %s245
        %p247 = pneg %p105
        %p248 = pneg %p102
        %p249 = pneg %p126
        %p250 = pneg %p123
        %p251 = pneg %p152
        %p252 = pneg %p149
        %s253 = smul.u32 %s38, 128
        %s254 = sadd.s32 %s253, %s39
        %s255 = sld [smem:[#allocation3 + %s254]]
        %s256 = smul.u32 %s38, 128
        %s257 = sadd.s32 %s256, %s39
        %s258 = sld [smem:[#allocation4 + %s257]]
        %p259 = scmp.eq.s32.totalorder %s39, 0
        // Predicated region
        $region41: #{tpu_custom_call.1} parent=31 // pred_check
          %p260 = pneg %p259
        $region42: #{tpu_custom_call.1} parent=31 // pred_check_branch
          %262 = sbr.rel (%p260) target = $region44
        $region43: #{tpu_custom_call.1} parent=31 // pred_region
          %263 = vst [vmem:[#allocation11] sm:$0x1] 0.0
        $region44: #{tpu_custom_call.1} parent=31 // pred_fallthru
          _
        %v264 = vld [vmem:[%s224] sm:$0x1]
        %v265 = vld [vmem:[%s232] sm:$0x1]
        %v266 = vmul.f32 %v264, %v265
        %vm267 = vcmask 1040384
        %v268 = vsel %vm267, %v266, 0.0
        %269 = vadd.xlane.f32.xlu0 %v268
        %v270 = vpop.xlane.xlu0 %269
        %s271 = sld [smem:[#allocation5]]
        %v272 = vstv %s271
        %v273 = vadd.f32 %v270, %v272
        %v274 = vlaneseq
        %v275 = vand.u32 %v274, 127
        %v276 = vstv %s39
        %vm277 = vcmp.eq.s32.totalorder %v275, %v276
        %v278 = vld [vmem:[#allocation11] sm:$0x1]
        %v279 = vsel %vm277, %v273, %v278
        %280 = vst [vmem:[#allocation11] sm:$0x1] %v279
        // Predicated region
        $region45: #{tpu_custom_call.1} parent=31 // pred_check
          %p281 = pneg %p149
        $region46: #{tpu_custom_call.1} parent=31 // pred_check_branch
          %283 = sbr.rel (%p281) target = $region48
        $region47: #{tpu_custom_call.1} parent=31 // pred_region
          %s285 = ssub.s32 16, 16
          %286 = vsyncadd [#allocation8], %s285
          %s287 = smul.addr %s38, 16
          %s288 = scalar_lea.hbm %s5, %s287
          %s290 = sshll.u32 [#allocation11], 4
          %s291 = int_to_ptr.vmem [resolvable:$true] %s290
          %293 = dma.vmem_to_hbm [thread:$0]  %s291, 16, %s288, [#allocation8]
        $region48: #{tpu_custom_call.1} parent=31 // pred_fallthru
          _
        // Predicated region
        $region49: #{tpu_custom_call.1} parent=31 // pred_check
          %p294 = pneg %p149
        $region50: #{tpu_custom_call.1} parent=31 // pred_check_branch
          %296 = sbr.rel (%p294) target = $region52
        $region51: #{tpu_custom_call.1} parent=31 // pred_region
          %297 = dma.done [#allocation8], 16
        $region52: #{tpu_custom_call.1} parent=31 // pred_fallthru
          _
      $region32: #{tpu_custom_call.1} parent=5 // pred_fallthru
        _
      %p298 = scmp.le.s32.totalorder 2, %s29
      // Predicated region
      $region53: #{tpu_custom_call.1} parent=5 // pred_check
        %p299 = pneg %p298
      $region54: #{tpu_custom_call.1} parent=5 // pred_check_branch
        %301 = sbr.rel (%p299) target = $region56
      $region55: #{tpu_custom_call.1} parent=5 // pred_region
        %s302 = ssub.s32 %s29, 2
      $region56: #{tpu_custom_call.1} parent=5 // pred_fallthru
        _
    $region6: #{tpu_custom_call.1} parent=1 // loop_footer
      %s33 = sadd.s32 1, %s29
    $region7: #{tpu_custom_call.1} parent=1 // loop_footer_branch
      %28 = sbr.rel target = $region3
    $region8: #{tpu_custom_call.1} parent=1 // loop_exit
      _
    %303 = vsyncpa [#allocation7], 1
    %s304 = scalar_lea.sflag [#allocation7], 1
    %305 = vsyncpa %s304, 1
    %306 = vsyncpa [#allocation10], 1
    %s307 = scalar_lea.sflag [#allocation10], 1
    %308 = vsyncpa %s307, 1
    %309 = vsyncpa [#allocation8], 1
    %s310 = scalar_lea.sflag [#allocation8], 1
    %311 = vsyncpa %s310, 1

</llo_original>
